<compile_context>
chip_gen: v5e
topology: v5e:2x2
jax: 0.10.0
libtpu: 0.0.40
codegen_flags: <defaults>
</compile_context>

<pallas_src>
import functools

import jax
import jax.numpy as jnp
from jax import lax
from jax.experimental import pallas as pl
from jax.experimental.pallas import tpu as pltpu


# ---------------------------------------------------------------------------
# Graph preprocessing (pure JAX, O(E)). Produces dense per-node operands.
# ---------------------------------------------------------------------------
def _spline_basis(edge_attr, kernel_size, dim):
    """Degree-1 open B-spline basis (torch_spline_conv defaults).

    Returns beta [E, kernel_size**dim]: per-edge coefficients over the flattened
    kernel grid (dimension 0 is the fastest-varying index).
    """
    pseudo = jnp.clip(edge_attr.astype(jnp.float32), 0.0, 1.0)
    v = pseudo * (kernel_size - 1)                 # open spline, degree 1
    lo = jnp.floor(v)
    frac = v - lo
    lo = lo.astype(jnp.int32)
    E = edge_attr.shape[0]
    K = kernel_size ** dim
    beta = jnp.zeros((E, K), jnp.float32)
    rows = jnp.arange(E)
    for s in range(2 ** dim):                      # 2^dim active basis products per edge
        w = jnp.ones((E,), jnp.float32)
        idx = jnp.zeros((E,), jnp.int32)
        stride = 1
        for d in range(dim):
            bit = (s >> d) & 1
            w = w * (frac[:, d] if bit else (1.0 - frac[:, d]))
            kd = jnp.minimum(lo[:, d] + bit, kernel_size - 1)   # clamp; weight is 0 there
            idx = idx + kd * stride
            stride *= kernel_size
        beta = beta.at[rows, idx].add(w)
    return beta


def _preprocess(x, edge_index, edge_attr, *, kernel_size, dim):
    """Edge-level gather/scatter done once in XLA; only dense slabs go to the kernel."""
    N, F0 = x.shape
    K = kernel_size ** dim
    src, dst = edge_index[0], edge_index[1]

    # sp[i, k*F0 + f] = sum_{e: dst(e)=i} basis[e, k] * x[src(e), f]
    beta = _spline_basis(edge_attr, kernel_size, dim)                  # [E, K]
    xg = x[src]                                                        # [E, F0]
    p = (beta[:, :, None] * xg[:, None, :]).reshape(-1, K * F0)        # [E, K*F0]
    sp = jnp.zeros((N, K * F0), jnp.float32).at[dst].add(p)            # [N, K*F0]

    # In-degree (duplicate edges counted) -- both convs use MEAN aggregation.
    adj = jnp.zeros((N, N), jnp.float32).at[dst, src].add(1.0)         # adj[i, j] = #edges j->i
    deg = jnp.sum(adj, axis=1, keepdims=True)
    inv_deg = jnp.where(deg > 0, 1.0 / deg, 0.0)                       # zero-degree nodes -> 0

    sp_mean = sp * inv_deg                                             # fold mean into the slab
    anorm = adj * inv_deg                                              # row-normalized adjacency
    return sp_mean, anorm


# ---------------------------------------------------------------------------
# Fused Pallas kernel: SplineConv -> ELU -> SAGEConv -> ELU -> concat -> Linear
#   operands:
#     xa    [N, K*F0 + F0]   = [sp * inv_deg | x]
#     anorm [N, N]           row-normalized adjacency (mean aggregation)
#     w1    [K*F0 + F0, 2C]  = [[W_spl, 0], [W_root, W_fx]]
#     w2    [C, 3C]          = [W_l | W_r | W_f1]
#     wf2   [C, C]           = W_f2
#     bias  [3, C]           = [b_spl ; b_l ; b_f]
# ---------------------------------------------------------------------------
def _elu(z):
    # F.elu(z, alpha=1.0); exp argument clamped so the untaken branch never overflows.
    return jnp.where(z > 0, z, jnp.exp(jnp.minimum(z, 0.0)) - 1.0)


def _fused_kernel(xa_ref, anorm_ref, w1_ref, w2_ref, wf2_ref, b_ref, out_ref):
    f32 = jnp.float32
    C = out_ref.shape[-1]

    # --- matmul 1: spline aggregation + root transform + x-part of final Linear ----
    m1 = jnp.dot(xa_ref[...], w1_ref[...], preferred_element_type=f32)   # [N, 2C]
    x1 = _elu(m1[:, :C] + b_ref[0:1, :])                                 # [N, C]
    fx = m1[:, C:]                                                       # x @ W_fx

    # --- matmul 2: all x1-LHS products at once:  x1 @ [W_l | W_r | W_f1] -----------
    m2 = jnp.dot(x1, w2_ref[...], preferred_element_type=f32)            # [N, 3C]

    # --- matmul 3: SAGE mean aggregation via associativity  anorm @ (x1 @ W_l) -----
    nbr = jnp.dot(anorm_ref[...], m2[:, :C], preferred_element_type=f32)
    x2 = _elu(nbr + m2[:, C:2 * C] + b_ref[1:2, :])                      # [N, C]

    # --- matmul 4 + combine the split concat-Linear contributions ------------------
    out = (fx + m2[:, 2 * C:]
           + jnp.dot(x2, wf2_ref[...], preferred_element_type=f32)
           + b_ref[2:3, :])
    out_ref[...] = out                                                   # lane-dense store


@functools.partial(jax.jit, static_argnames=("kernel_size", "dim"))
def hybrid_graph_forward(x, edge_index, edge_attr, params, *, kernel_size, dim):
    N, F0 = x.shape
    C = params["final"]["b"].shape[-1]
    K = kernel_size ** dim

    sp_mean, anorm = _preprocess(x, edge_index, edge_attr,
                                 kernel_size=kernel_size, dim=dim)
    xa = jnp.concatenate([sp_mean, x], axis=-1)                          # [N, K*F0 + F0]

    # Split the concat-Linear weight:  cat([x, x1, x2]) @ Wf == x@Wfx + x1@Wf1 + x2@Wf2
    wf = params["final"]["w"]                                            # [F0 + 2C, C]
    w_fx, w_f1, w_f2 = wf[:F0], wf[F0:F0 + C], wf[F0 + C:]

    # Stacked weight for matmul 1:  [[W_spl, 0], [W_root, W_fx]]
    w1 = jnp.concatenate(
        [jnp.concatenate([params["spline"]["w"], jnp.zeros((K * F0, C), jnp.float32)], axis=1),
         jnp.concatenate([params["spline"]["w_root"], w_fx], axis=1)],
        axis=0)                                                          # [K*F0 + F0, 2C]

    # Stacked weight for matmul 2:  [W_l | W_r | W_f1]
    w2 = jnp.concatenate([params["sage"]["w_l"], params["sage"]["w_r"], w_f1], axis=1)  # [C, 3C]

    # Packed biases:  row 0 = b_spl, row 1 = b_l, row 2 = b_f
    bias = jnp.concatenate([params["spline"]["b"], params["sage"]["b_l"],
                            params["final"]["b"]], axis=0)               # [3, C]

    args = (xa, anorm, w1, w2, w_f2, bias)
    vmem = pl.BlockSpec(memory_space=pltpu.MemorySpace.VMEM)
    return pl.pallas_call(
        _fused_kernel,
        out_shape=jax.ShapeDtypeStruct((N, C), jnp.float32),
        in_specs=[vmem] * len(args),
        out_specs=vmem,
    )(*args)


# ---------------------------------------------------------------------------
# Pure-JAX reference (same math, HIGHEST-precision matmuls) for verification.
# ---------------------------------------------------------------------------
def hybrid_graph_reference(x, edge_index, edge_attr, params, *, kernel_size, dim):
    hp = lax.Precision.HIGHEST
    sp_mean, anorm = _preprocess(x, edge_index, edge_attr,
                                 kernel_size=kernel_size, dim=dim)
    x1 = _elu(jnp.dot(sp_mean, params["spline"]["w"], precision=hp)
              + jnp.dot(x, params["spline"]["w_root"], precision=hp)
              + params["spline"]["b"])
    nbr = jnp.dot(anorm, x1, precision=hp)
    x2 = _elu(jnp.dot(nbr, params["sage"]["w_l"], precision=hp) + params["sage"]["b_l"]
              + jnp.dot(x1, params["sage"]["w_r"], precision=hp))
    cat = jnp.concatenate([x, x1, x2], axis=-1)
    return jnp.dot(cat, params["final"]["w"], precision=hp) + params["final"]["b"]


def init_params(key, in_channels, out_channels, dim, kernel_size):
    K = kernel_size ** dim
    C = out_channels
    ks = jax.random.split(key, 8)
    s = 0.2
    return {
        "spline": {
            "w":      s * jax.random.normal(ks[0], (K * in_channels, C), jnp.float32),
            "w_root": s * jax.random.normal(ks[1], (in_channels, C), jnp.float32),
            "b":      s * jax.random.normal(ks[2], (1, C), jnp.float32),
        },
        "sage": {
            "w_l": s * jax.random.normal(ks[3], (C, C), jnp.float32),
            "b_l": s * jax.random.normal(ks[4], (1, C), jnp.float32),
            "w_r": s * jax.random.normal(ks[5], (C, C), jnp.float32),
        },
        "final": {
            "w": s * jax.random.normal(ks[6], (in_channels + 2 * C, C), jnp.float32),
            "b": s * jax.random.normal(ks[7], (1, C), jnp.float32),
        },
    }


if __name__ == "__main__":
    # num_layers=2  ->  [SplineConv, SAGEConv]; cat=True, lin=True, dropout=0.0
    in_channels, out_channels, dim, kernel_size = 8, 16, 2, 5
    N, E = 32, 96

    key = jax.random.PRNGKey(0)
    kx, ke, ka, kp = jax.random.split(key, 4)
    x = jax.random.normal(kx, (N, in_channels), jnp.float32)
    edge_index = jax.random.randint(ke, (2, E), 0, N, jnp.int32)
    edge_attr = jax.random.uniform(ka, (E, dim), jnp.float32)   # pseudo-coordinates in [0, 1)
    params = init_params(kp, in_channels, out_channels, dim, kernel_size)

    out = hybrid_graph_forward(x, edge_index, edge_attr, params,
                               kernel_size=kernel_size, dim=dim)
    out = jax.block_until_ready(out)
    assert out.shape == (N, out_channels), out.shape
    assert bool(jnp.all(jnp.isfinite(out)))

    ref = hybrid_graph_reference(x, edge_index, edge_attr, params,
                                 kernel_size=kernel_size, dim=dim)
    err = float(jnp.max(jnp.abs(out - ref)))
    assert err < 1e-3, f"max abs err vs reference: {err}"
    print("KERNEL_OK")
</pallas_src>

<mosaic_0001>
module attributes {stable_mosaic.version = 11 : i64} {
  func.func @_fused_kernel(%arg0: memref<32x208xf32, #tpu.memory_space<vmem>>, %arg1: memref<32x32xf32, #tpu.memory_space<vmem>>, %arg2: memref<208x32xf32, #tpu.memory_space<vmem>>, %arg3: memref<16x48xf32, #tpu.memory_space<vmem>>, %arg4: memref<16x16xf32, #tpu.memory_space<vmem>>, %arg5: memref<3x16xf32, #tpu.memory_space<vmem>>, %arg6: memref<32x16xf32, #tpu.memory_space<vmem>>) attributes {dimension_semantics = [], scalar_prefetch = 0 : i64, scratch_operands = 0 : i64, tpu.core_type = #tpu.core_type<tc>} {
    %c0 = arith.constant 0 : index
    %c0_0 = arith.constant 0 : index
    %0 = vector.load %arg0[%c0, %c0_0] : memref<32x208xf32, #tpu.memory_space<vmem>>, vector<32x208xf32>
    %c0_1 = arith.constant 0 : index
    %c0_2 = arith.constant 0 : index
    %1 = vector.load %arg2[%c0_1, %c0_2] : memref<208x32xf32, #tpu.memory_space<vmem>>, vector<208x32xf32>
    %cst = arith.constant dense<0.000000e+00> : vector<32x32xf32>
    %2 = tpu.matmul %0, %1, %cst {dimension_numbers = #tpu.dot_dimension_numbers<[1], [0], [0], [1], [0, 0, 1, 1], [], []>} : vector<32x208xf32>, vector<208x32xf32>, vector<32x32xf32> -> vector<32x32xf32>
    %3 = vector.extract_strided_slice %2 {offsets = [0, 0], sizes = [32, 16], strides = [1, 1]} : vector<32x32xf32> to vector<32x16xf32>
    %c0_3 = arith.constant 0 : index
    %c0_4 = arith.constant 0 : index
    %4 = vector.load %arg5[%c0_3, %c0_4] : memref<3x16xf32, #tpu.memory_space<vmem>>, vector<1x16xf32>
    %5 = vector.broadcast %4 : vector<1x16xf32> to vector<32x16xf32>
    %6 = arith.addf %3, %5 : vector<32x16xf32>
    %cst_5 = arith.constant 0.000000e+00 : f32
    %7 = vector.broadcast %cst_5 : f32 to vector<32x16xf32>
    %8 = arith.cmpf ogt, %6, %7 : vector<32x16xf32>
    %cst_6 = arith.constant 0.000000e+00 : f32
    %9 = vector.broadcast %cst_6 : f32 to vector<32x16xf32>
    %10 = arith.minimumf %6, %9 : vector<32x16xf32>
    %11 = math.exp %10 : vector<32x16xf32>
    %cst_7 = arith.constant 1.000000e+00 : f32
    %12 = vector.broadcast %cst_7 : f32 to vector<32x16xf32>
    %13 = arith.subf %11, %12 : vector<32x16xf32>
    %14 = arith.select %8, %6, %13 : vector<32x16xi1>, vector<32x16xf32>
    %15 = vector.extract_strided_slice %2 {offsets = [0, 16], sizes = [32, 16], strides = [1, 1]} : vector<32x32xf32> to vector<32x16xf32>
    %c0_8 = arith.constant 0 : index
    %c0_9 = arith.constant 0 : index
    %16 = vector.load %arg3[%c0_8, %c0_9] : memref<16x48xf32, #tpu.memory_space<vmem>>, vector<16x48xf32>
    %cst_10 = arith.constant dense<0.000000e+00> : vector<32x48xf32>
    %17 = tpu.matmul %14, %16, %cst_10 {dimension_numbers = #tpu.dot_dimension_numbers<[1], [0], [0], [1], [0, 0, 1, 1], [], []>} : vector<32x16xf32>, vector<16x48xf32>, vector<32x48xf32> -> vector<32x48xf32>
    %c0_11 = arith.constant 0 : index
    %c0_12 = arith.constant 0 : index
    %18 = vector.load %arg1[%c0_11, %c0_12] : memref<32x32xf32, #tpu.memory_space<vmem>>, vector<32x32xf32>
    %19 = vector.extract_strided_slice %17 {offsets = [0, 0], sizes = [32, 16], strides = [1, 1]} : vector<32x48xf32> to vector<32x16xf32>
    %cst_13 = arith.constant dense<0.000000e+00> : vector<32x16xf32>
    %20 = tpu.matmul %18, %19, %cst_13 {dimension_numbers = #tpu.dot_dimension_numbers<[1], [0], [0], [1], [0, 0, 1, 1], [], []>} : vector<32x32xf32>, vector<32x16xf32>, vector<32x16xf32> -> vector<32x16xf32>
    %21 = vector.extract_strided_slice %17 {offsets = [0, 16], sizes = [32, 16], strides = [1, 1]} : vector<32x48xf32> to vector<32x16xf32>
    %22 = arith.addf %20, %21 : vector<32x16xf32>
    %c1 = arith.constant 1 : index
    %c0_14 = arith.constant 0 : index
    %23 = vector.load %arg5[%c1, %c0_14] : memref<3x16xf32, #tpu.memory_space<vmem>>, vector<1x16xf32>
    %24 = vector.broadcast %23 : vector<1x16xf32> to vector<32x16xf32>
    %25 = arith.addf %22, %24 : vector<32x16xf32>
    %cst_15 = arith.constant 0.000000e+00 : f32
    %26 = vector.broadcast %cst_15 : f32 to vector<32x16xf32>
    %27 = arith.cmpf ogt, %25, %26 : vector<32x16xf32>
    %cst_16 = arith.constant 0.000000e+00 : f32
    %28 = vector.broadcast %cst_16 : f32 to vector<32x16xf32>
    %29 = arith.minimumf %25, %28 : vector<32x16xf32>
    %30 = math.exp %29 : vector<32x16xf32>
    %cst_17 = arith.constant 1.000000e+00 : f32
    %31 = vector.broadcast %cst_17 : f32 to vector<32x16xf32>
    %32 = arith.subf %30, %31 : vector<32x16xf32>
    %33 = arith.select %27, %25, %32 : vector<32x16xi1>, vector<32x16xf32>
    %34 = vector.extract_strided_slice %17 {offsets = [0, 32], sizes = [32, 16], strides = [1, 1]} : vector<32x48xf32> to vector<32x16xf32>
    %35 = arith.addf %15, %34 : vector<32x16xf32>
    %c0_18 = arith.constant 0 : index
    %c0_19 = arith.constant 0 : index
    %36 = vector.load %arg4[%c0_18, %c0_19] : memref<16x16xf32, #tpu.memory_space<vmem>>, vector<16x16xf32>
    %cst_20 = arith.constant dense<0.000000e+00> : vector<32x16xf32>
    %37 = tpu.matmul %33, %36, %cst_20 {dimension_numbers = #tpu.dot_dimension_numbers<[1], [0], [0], [1], [0, 0, 1, 1], [], []>} : vector<32x16xf32>, vector<16x16xf32>, vector<32x16xf32> -> vector<32x16xf32>
    %38 = arith.addf %35, %37 : vector<32x16xf32>
    %c2 = arith.constant 2 : index
    %c0_21 = arith.constant 0 : index
    %39 = vector.load %arg5[%c2, %c0_21] : memref<3x16xf32, #tpu.memory_space<vmem>>, vector<1x16xf32>
    %40 = vector.broadcast %39 : vector<1x16xf32> to vector<32x16xf32>
    %41 = arith.addf %38, %40 : vector<32x16xf32>
    %c0_22 = arith.constant 0 : index
    %c0_23 = arith.constant 0 : index
    %42 = vector.load %arg6[%c0_22, %c0_23] : memref<32x16xf32, #tpu.memory_space<vmem>>, vector<32x16xf32>
    tpu.vector_store %arg6[%c0_22, %c0_23], %41 {strides = array<i32>} : memref<32x16xf32, #tpu.memory_space<vmem>>, vector<32x16xf32>,
    return
  }
}

</mosaic_0001>

<llo_original>
// kernel: hybrid_graph_forward.1
$region0: #{hybrid_graph_forward.1}
  #allocation0 [shape = 'u32[]', space=smem, size = 0x4, offset = 0x4, fixed_abs, tag = 'smem constant byte address 0x4 - core index']
  #allocation1 [shape = 'u32[72,128]{1,0:T(1,128)}', space=vmem, size = 0x9000, scoped, tag = 'internal scratch']
  %s0 = inlined_call_operand.vmem [shape: f32[32,208], index: 0, kind: input, shape index: {}]
  %s1 = inlined_call_operand.vmem [shape: f32[32,32], index: 1, kind: input, shape index: {}]
  %s2 = inlined_call_operand.vmem [shape: f32[208,32], index: 2, kind: input, shape index: {}]
  %s3 = inlined_call_operand.vmem [shape: f32[16,48], index: 3, kind: input, shape index: {}]
  %s4 = inlined_call_operand.vmem [shape: f32[16,16], index: 4, kind: input, shape index: {}]
  %s5 = inlined_call_operand.vmem [shape: f32[3,16], index: 5, kind: input, shape index: {}]
  %s6 = inlined_call_operand.vmem [shape: f32[32,16], index: 6, kind: output, shape index: {}]
  %s7 = sld [smem:[#allocation0]]
  $region34: #{hybrid_graph_forward.1} parent=0
    _
  %s9 = ssub.s32 1, %s7
  %s10 = scalar_select 0, %s9, %s7
  // Predicated region
  $region2: #{hybrid_graph_forward.1} parent=0 // pred_check
    _
  $region3: #{hybrid_graph_forward.1} parent=0 // pred_check_branch
    %12 = sbr.rel (0) target = $region5
  $region4: #{hybrid_graph_forward.1} parent=0 // pred_region
    _
  $region5: #{hybrid_graph_forward.1} parent=0 // pred_fallthru
    _
  // Predicated region
  $region6: #{hybrid_graph_forward.1} parent=0 // pred_check
    _
  $region7: #{hybrid_graph_forward.1} parent=0 // pred_check_branch
    %14 = sbr.rel (0) target = $region9
  $region8: #{hybrid_graph_forward.1} parent=0 // pred_region
    _
  $region9: #{hybrid_graph_forward.1} parent=0 // pred_fallthru
    _
  // Predicated region
  $region10: #{hybrid_graph_forward.1} parent=0 // pred_check
    _
  $region11: #{hybrid_graph_forward.1} parent=0 // pred_check_branch
    %16 = sbr.rel (0) target = $region13
  $region12: #{hybrid_graph_forward.1} parent=0 // pred_region
    _
  $region13: #{hybrid_graph_forward.1} parent=0 // pred_fallthru
    _
  // Predicated region
  $region14: #{hybrid_graph_forward.1} parent=0 // pred_check
    _
  $region15: #{hybrid_graph_forward.1} parent=0 // pred_check_branch
    %18 = sbr.rel (0) target = $region17
  $region16: #{hybrid_graph_forward.1} parent=0 // pred_region
    _
  $region17: #{hybrid_graph_forward.1} parent=0 // pred_fallthru
    _
  // Predicated region
  $region18: #{hybrid_graph_forward.1} parent=0 // pred_check
    _
  $region19: #{hybrid_graph_forward.1} parent=0 // pred_check_branch
    %20 = sbr.rel (0) target = $region21
  $region20: #{hybrid_graph_forward.1} parent=0 // pred_region
    _
  $region21: #{hybrid_graph_forward.1} parent=0 // pred_fallthru
    _
  // Predicated region
  $region22: #{hybrid_graph_forward.1} parent=0 // pred_check
    _
  $region23: #{hybrid_graph_forward.1} parent=0 // pred_check_branch
    %22 = sbr.rel (0) target = $region25
  $region24: #{hybrid_graph_forward.1} parent=0 // pred_region
    _
  $region25: #{hybrid_graph_forward.1} parent=0 // pred_fallthru
    _
  %v23 = vld [vmem:[%s0] sm:$0xff]
  %v24 = vld [vmem:[%s0 + $0x8] sm:$0xff]
  %v25 = vld [vmem:[%s0 + $0x10] sm:$0xff]
  %v26 = vld [vmem:[%s0 + $0x18] sm:$0xff]
  %v27 = vld [vmem:[%s0 + $0x20] sm:$0xff]
  %v28 = vld [vmem:[%s0 + $0x28] sm:$0xff]
  %v29 = vld [vmem:[%s0 + $0x30] sm:$0xff]
  %v30 = vld [vmem:[%s0 + $0x38] sm:$0xff]
  %v31 = vld [vmem:[%s2] sm:$0xff]
  %v32 = vld [vmem:[%s2 + $0x8] sm:$0xff]
  %v33 = vld [vmem:[%s2 + $0x10] sm:$0xff]
  %v34 = vld [vmem:[%s2 + $0x18] sm:$0xff]
  %v35 = vld [vmem:[%s2 + $0x20] sm:$0xff]
  %v36 = vld [vmem:[%s2 + $0x28] sm:$0xff]
  %v37 = vld [vmem:[%s2 + $0x30] sm:$0xff]
  %v38 = vld [vmem:[%s2 + $0x38] sm:$0xff]
  %v39 = vld [vmem:[%s2 + $0x40] sm:$0xff]
  %v40 = vld [vmem:[%s2 + $0x48] sm:$0xff]
  %v41 = vld [vmem:[%s2 + $0x50] sm:$0xff]
  %v42 = vld [vmem:[%s2 + $0x58] sm:$0xff]
  %v43 = vld [vmem:[%s2 + $0x60] sm:$0xff]
  %v44 = vld [vmem:[%s2 + $0x68] sm:$0xff]
  %v45 = vld [vmem:[%s2 + $0x70] sm:$0xff]
  %v46 = vld [vmem:[%s2 + $0x78] sm:$0xff]
  %v47 = vld [vmem:[%s2 + $0x80] sm:$0xff]
  %v48 = vld [vmem:[%s2 + $0x88] sm:$0xff]
  %v49 = vld [vmem:[%s2 + $0x90] sm:$0xff]
  %v50 = vld [vmem:[%s2 + $0x98] sm:$0xff]
  %v51 = vld [vmem:[%s2 + $0xa0] sm:$0xff]
  %v52 = vld [vmem:[%s2 + $0xa8] sm:$0xff]
  %v53 = vld [vmem:[%s2 + $0xb0] sm:$0xff]
  %v54 = vld [vmem:[%s2 + $0xb8] sm:$0xff]
  %v55 = vld [vmem:[%s2 + $0xc0] sm:$0xff]
  %v56 = vld [vmem:[%s2 + $0xc8] sm:$0xff]
  %vm57 = vcmask 654336
  %v59 = vsel %vm57, %v24, 0
  %v62 = vsel %vm57, %v26, 0
  %v65 = vsel %vm57, %v28, 0
  %v68 = vsel %vm57, %v30, 0
  %70 = vmatpush.msra.mxu0 %v46
  %71 = vmatpush.msra.mxu0 %v45
  %72 = vmatpush.msra.mxu0 %v44
  %73 = vmatpush.msra.mxu0 %v43
  %74 = vmatpush.msra.mxu0 %v42
  %75 = vmatpush.msra.mxu0 %v41
  %76 = vmatpush.msra.mxu0 %v40
  %77 = vmatpush.msra.mxu0 %v39
  %78 = vmatpush.msra.mxu0 %v38
  %79 = vmatpush.msra.mxu0 %v37
  %80 = vmatpush.msra.mxu0 %v36
  %81 = vmatpush.msra.mxu0 %v35
  %82 = vmatpush.msra.mxu0 %v34
  %83 = vmatpush.msra.mxu0 %v33
  %84 = vmatpush.msra.mxu0 %v32
  %85 = vmatpush.msra.mxu0 %v31
  %86 = vmatmul.f32.gmra.mxu0 %v23
  %v87 = vpop.f32.mrf.mxu0
  %v88 = vadd.f32 0.0, %v87
  %89 = vmatmul.f32.gmra.mxu0 %v25
  %v90 = vpop.f32.mrf.mxu0
  %v91 = vadd.f32 0.0, %v90
  %92 = vmatmul.f32.gmra.mxu0 %v27
  %v93 = vpop.f32.mrf.mxu0
  %v94 = vadd.f32 0.0, %v93
  %95 = vmatmul.f32.gmra.mxu0 %v29
  %v96 = vpop.f32.mrf.mxu0
  %v97 = vadd.f32 0.0, %v96
  %98 = vdwg.mxu0
  %99 = vmatpush.msra.mxu0 0.0
  %100 = vmatpush.msra.mxu0 0.0
  %101 = vmatpush.msra.mxu0 0.0
  %102 = vmatpush.msra.mxu0 0.0
  %103 = vmatpush.msra.mxu0 0.0
  %104 = vmatpush.msra.mxu0 0.0
  %105 = vmatpush.msra.mxu0 %v56
  %106 = vmatpush.msra.mxu0 %v55
  %107 = vmatpush.msra.mxu0 %v54
  %108 = vmatpush.msra.mxu0 %v53
  %109 = vmatpush.msra.mxu0 %v52
  %110 = vmatpush.msra.mxu0 %v51
  %111 = vmatpush.msra.mxu0 %v50
  %112 = vmatpush.msra.mxu0 %v49
  %113 = vmatpush.msra.mxu0 %v48
  %114 = vmatpush.msra.mxu0 %v47
  %115 = vmatmul.f32.gmra.mxu0 %v59
  %v116 = vpop.f32.mrf.mxu0
  %v117 = vadd.f32 %v88, %v116
  %118 = vmatmul.f32.gmra.mxu0 %v62
  %v119 = vpop.f32.mrf.mxu0
  %v120 = vadd.f32 %v91, %v119
  %121 = vmatmul.f32.gmra.mxu0 %v65
  %v122 = vpop.f32.mrf.mxu0
  %v123 = vadd.f32 %v94, %v122
  %124 = vmatmul.f32.gmra.mxu0 %v68
  %v125 = vpop.f32.mrf.mxu0
  %v126 = vadd.f32 %v97, %v125
  %127 = vdwg.mxu0
  %v128 = vld [vmem:[%s5] sm:$0x1]
  %v129 = vperm.slane %v128, 0
  %v130 = vadd.f32 %v117, %v129
  %v131 = vadd.f32 %v120, %v129
  %v132 = vadd.f32 %v123, %v129
  %v133 = vadd.f32 %v126, %v129
  %vm134 = vcmp.gt.f32.partialorder %v130, 0.0
  %vm135 = vcmp.gt.f32.partialorder %v131, 0.0
  %vm136 = vcmp.gt.f32.partialorder %v132, 0.0
  %vm137 = vcmp.gt.f32.partialorder %v133, 0.0
  %v138 = vmin.f32 %v130, 0.0
  %v139 = vmin.f32 %v131, 0.0
  %v140 = vmin.f32 %v132, 0.0
  %v141 = vmin.f32 %v133, 0.0
  %v142 = vmul.f32 %v138, 1.442695
  %v143 = vpow.pop %v142
  %v144 = vmul.f32 %v139, 1.442695
  %v145 = vpow.pop %v144
  %v146 = vmul.f32 %v140, 1.442695
  %v147 = vpow.pop %v146
  %v148 = vmul.f32 %v141, 1.442695
  %v149 = vpow.pop %v148
  %v150 = vsub.f32 %v143, 1.0
  %v151 = vsub.f32 %v145, 1.0
  %v152 = vsub.f32 %v147, 1.0
  %v153 = vsub.f32 %v149, 1.0
  %v154 = vsel %vm134, %v130, %v150
  %v155 = vsel %vm135, %v131, %v151
  %v156 = vsel %vm136, %v132, %v152
  %v157 = vsel %vm137, %v133, %v153
  %v158 = vld [vmem:[%s3] sm:$0xff]
  %v159 = vld [vmem:[%s3 + $0x8] sm:$0xff]
  %vm160 = vcmask 130048
  %v162 = vsel %vm160, %v154, 0
  %v165 = vsel %vm160, %v155, 0
  %v168 = vsel %vm160, %v156, 0
  %v171 = vsel %vm160, %v157, 0
  %173 = vmatpush.msra.mxu0 0.0
  %174 = vmatpush.msra.mxu0 0.0
  %175 = vmatpush.msra.mxu0 0.0
  %176 = vmatpush.msra.mxu0 0.0
  %177 = vmatpush.msra.mxu0 0.0
  %178 = vmatpush.msra.mxu0 0.0
  %179 = vmatpush.msra.mxu0 0.0
  %180 = vmatpush.msra.mxu0 0.0
  %181 = vmatpush.msra.mxu0 0.0
  %182 = vmatpush.msra.mxu0 0.0
  %183 = vmatpush.msra.mxu0 0.0
  %184 = vmatpush.msra.mxu0 0.0
  %185 = vmatpush.msra.mxu0 0.0
  %186 = vmatpush.msra.mxu0 0.0
  %187 = vmatpush.msra.mxu0 %v159
  %188 = vmatpush.msra.mxu0 %v158
  %189 = vmatmul.f32.gmra.mxu0 %v162
  %v190 = vpop.f32.mrf.mxu0
  %v191 = vadd.f32 0.0, %v190
  %192 = vmatmul.f32.gmra.mxu0 %v165
  %v193 = vpop.f32.mrf.mxu0
  %v194 = vadd.f32 0.0, %v193
  %195 = vmatmul.f32.gmra.mxu0 %v168
  %v196 = vpop.f32.mrf.mxu0
  %v197 = vadd.f32 0.0, %v196
  %198 = vmatmul.f32.gmra.mxu0 %v171
  %v199 = vpop.f32.mrf.mxu0
  %v200 = vadd.f32 0.0, %v199
  %201 = vdwg.mxu0
  %v202 = vld [vmem:[%s1] sm:$0xff]
  %v203 = vld [vmem:[%s1 + $0x8] sm:$0xff]
  %v204 = vld [vmem:[%s1 + $0x10] sm:$0xff]
  %v205 = vld [vmem:[%s1 + $0x18] sm:$0xff]
  %210 = vrot.lane.b32.xlu0 %v191, 112
  %v211 = vpop.permute.xlu0 %210
  %212 = vrot.lane.b32.xlu0 %v194, 112
  %v213 = vpop.permute.xlu0 %212
  %214 = vrot.lane.b32.xlu0 %v197, 112
  %v215 = vpop.permute.xlu0 %214
  %216 = vrot.lane.b32.xlu0 %v200, 112
  %v217 = vpop.permute.xlu0 %216
  %vm222 = vcmask 261120
  %v224 = vsel %vm222, %v202, 0
  %v227 = vsel %vm222, %v203, 0
  %v230 = vsel %vm222, %v204, 0
  %v233 = vsel %vm222, %v205, 0
  %235 = vmatpush.msra.mxu0 0.0
  %236 = vmatpush.msra.mxu0 0.0
  %237 = vmatpush.msra.mxu0 0.0
  %238 = vmatpush.msra.mxu0 0.0
  %239 = vmatpush.msra.mxu0 0.0
  %240 = vmatpush.msra.mxu0 0.0
  %241 = vmatpush.msra.mxu0 0.0
  %242 = vmatpush.msra.mxu0 0.0
  %243 = vmatpush.msra.mxu0 0.0
  %244 = vmatpush.msra.mxu0 0.0
  %245 = vmatpush.msra.mxu0 0.0
  %246 = vmatpush.msra.mxu0 0.0
  %247 = vmatpush.msra.mxu0 %v200
  %248 = vmatpush.msra.mxu0 %v197
  %249 = vmatpush.msra.mxu0 %v194
  %250 = vmatpush.msra.mxu0 %v191
  %251 = vmatmul.f32.gmra.mxu0 %v224
  %v252 = vpop.f32.mrf.mxu0
  %v253 = vadd.f32 %v211, %v252
  %254 = vmatmul.f32.gmra.mxu0 %v227
  %v255 = vpop.f32.mrf.mxu0
  %v256 = vadd.f32 %v213, %v255
  %257 = vmatmul.f32.gmra.mxu0 %v230
  %v258 = vpop.f32.mrf.mxu0
  %v259 = vadd.f32 %v215, %v258
  %260 = vmatmul.f32.gmra.mxu0 %v233
  %v261 = vpop.f32.mrf.mxu0
  %v262 = vadd.f32 %v217, %v261
  %263 = vdwg.mxu0
  %v264 = vld [vmem:[%s5 + $0x1] sm:$0x1]
  %v265 = vperm.slane %v264, 0
  %v266 = vadd.f32 %v253, %v265
  %v267 = vadd.f32 %v256, %v265
  %v268 = vadd.f32 %v259, %v265
  %v269 = vadd.f32 %v262, %v265
  %vm270 = vcmp.gt.f32.partialorder %v266, 0.0
  %vm271 = vcmp.gt.f32.partialorder %v267, 0.0
  %vm272 = vcmp.gt.f32.partialorder %v268, 0.0
  %vm273 = vcmp.gt.f32.partialorder %v269, 0.0
  %v274 = vmin.f32 %v266, 0.0
  %v275 = vmin.f32 %v267, 0.0
  %v276 = vmin.f32 %v268, 0.0
  %v277 = vmin.f32 %v269, 0.0
  %v278 = vmul.f32 %v274, 1.442695
  %v279 = vpow.pop %v278
  %v280 = vmul.f32 %v275, 1.442695
  %v281 = vpow.pop %v280
  %v282 = vmul.f32 %v276, 1.442695
  %v283 = vpow.pop %v282
  %v284 = vmul.f32 %v277, 1.442695
  %v285 = vpow.pop %v284
  %v286 = vsub.f32 %v279, 1.0
  %v287 = vsub.f32 %v281, 1.0
  %v288 = vsub.f32 %v283, 1.0
  %v289 = vsub.f32 %v285, 1.0
  %v290 = vsel %vm270, %v266, %v286
  %v291 = vsel %vm271, %v267, %v287
  %v292 = vsel %vm272, %v268, %v288
  %v293 = vsel %vm273, %v269, %v289
  %v294 = vadd.f32 %v117, %v211
  %v295 = vadd.f32 %v120, %v213
  %v296 = vadd.f32 %v123, %v215
  %v297 = vadd.f32 %v126, %v217
  %v298 = vld [vmem:[%s4] sm:$0xff]
  %v299 = vld [vmem:[%s4 + $0x8] sm:$0xff]
  %v301 = vsel %vm160, %v290, 0
  %v304 = vsel %vm160, %v291, 0
  %v307 = vsel %vm160, %v292, 0
  %v310 = vsel %vm160, %v293, 0
  %312 = vmatpush.msra.mxu0 0.0
  %313 = vmatpush.msra.mxu0 0.0
  %314 = vmatpush.msra.mxu0 0.0
  %315 = vmatpush.msra.mxu0 0.0
  %316 = vmatpush.msra.mxu0 0.0
  %317 = vmatpush.msra.mxu0 0.0
  %318 = vmatpush.msra.mxu0 0.0
  %319 = vmatpush.msra.mxu0 0.0
  %320 = vmatpush.msra.mxu0 0.0
  %321 = vmatpush.msra.mxu0 0.0
  %322 = vmatpush.msra.mxu0 0.0
  %323 = vmatpush.msra.mxu0 0.0
  %324 = vmatpush.msra.mxu0 0.0
  %325 = vmatpush.msra.mxu0 0.0
  %326 = vmatpush.msra.mxu0 %v299
  %327 = vmatpush.msra.mxu0 %v298
  %328 = vmatmul.f32.gmra.mxu0 %v301
  %v329 = vpop.f32.mrf.mxu0
  %v330 = vadd.f32 0.0, %v329
  %331 = vmatmul.f32.gmra.mxu0 %v304
  %v332 = vpop.f32.mrf.mxu0
  %v333 = vadd.f32 0.0, %v332
  %334 = vmatmul.f32.gmra.mxu0 %v307
  %v335 = vpop.f32.mrf.mxu0
  %v336 = vadd.f32 0.0, %v335
  %337 = vmatmul.f32.gmra.mxu0 %v310
  %v338 = vpop.f32.mrf.mxu0
  %v339 = vadd.f32 0.0, %v338
  %340 = vdwg.mxu0
  %345 = vrot.lane.b32.xlu0 %v330, 16
  %v346 = vpop.permute.xlu0 %345
  %347 = vrot.lane.b32.xlu0 %v333, 16
  %v348 = vpop.permute.xlu0 %347
  %349 = vrot.lane.b32.xlu0 %v336, 16
  %v350 = vpop.permute.xlu0 %349
  %351 = vrot.lane.b32.xlu0 %v339, 16
  %v352 = vpop.permute.xlu0 %351
  %v357 = vadd.f32 %v294, %v346
  %v358 = vadd.f32 %v295, %v348
  %v359 = vadd.f32 %v296, %v350
  %v360 = vadd.f32 %v297, %v352
  %v361 = vld [vmem:[%s5 + $0x2] sm:$0x1]
  %v362 = vperm.slane %v361, 0
  %364 = vrot.lane.b32.xlu0 %v362, 16
  %v365 = vpop.permute.xlu0 %364
  %v367 = vadd.f32 %v357, %v365
  %v368 = vadd.f32 %v358, %v365
  %v369 = vadd.f32 %v359, %v365
  %v370 = vadd.f32 %v360, %v365
  %375 = vrot.lane.b32.xlu0 %v367, 112
  %v376 = vpop.permute.xlu0 %375
  %377 = vrot.lane.b32.xlu0 %v368, 112
  %v378 = vpop.permute.xlu0 %377
  %379 = vrot.lane.b32.xlu0 %v369, 112
  %v380 = vpop.permute.xlu0 %379
  %381 = vrot.lane.b32.xlu0 %v370, 112
  %v382 = vpop.permute.xlu0 %381
  %387 = vst.msk [vmem:[%s6] sm:$0xff] %vm160, %v376
  %388 = vst.msk [vmem:[%s6 + $0x8] sm:$0xff] %vm160, %v378
  %389 = vst.msk [vmem:[%s6 + $0x10] sm:$0xff] %vm160, %v380
  %390 = vst.msk [vmem:[%s6 + $0x18] sm:$0xff] %vm160, %v382
  // Predicated region
  $region26: #{hybrid_graph_forward.1} parent=0 // pred_check
    _
  $region27: #{hybrid_graph_forward.1} parent=0 // pred_check_branch
    %392 = sbr.rel (0) target = $region29
  $region28: #{hybrid_graph_forward.1} parent=0 // pred_region
    _
  $region29: #{hybrid_graph_forward.1} parent=0 // pred_fallthru
    _
  // Predicated region
  $region30: #{hybrid_graph_forward.1} parent=0 // pred_check
    _
  $region31: #{hybrid_graph_forward.1} parent=0 // pred_check_branch
    %394 = sbr.rel (0) target = $region33
  $region32: #{hybrid_graph_forward.1} parent=0 // pred_region
    _
  $region33: #{hybrid_graph_forward.1} parent=0 // pred_fallthru
    _

</llo_original>
